<compile_context>
chip_gen: v7x
topology: tpu7x:2x2x1
jax: 0.10.0
libtpu: 0.0.40
codegen_flags: <defaults>
</compile_context>

<pallas_src>
import jax
import jax.numpy as jnp
from jax.experimental import pallas as pl
from jax.experimental.pallas import tpu as pltpu

# Synthetic config (consistent with BasicCMAM.__init__ shape contract)
BATCH = 8
D_AUDIO = 24          # raw audio-modality feature dim
D_VIDEO = 40          # raw video-modality feature dim
E_AUDIO = 16          # audio encoder embedding dim
E_VIDEO = 16          # video encoder embedding dim
ASSOC_IN = E_AUDIO + E_VIDEO   # assoc_net_input_size (concat fusion)
ASSOC_HID = 64                 # assoc_net_hidden_size
ASSOC_OUT = 32                 # assoc_net_output_size
LANES = 128                    # lane-dense padded width

# Static layout of the packed weight slab (all blocks 8-row aligned).
R_W1A = 0                      # rows [0, 24)   : W1a'
R_W1V = R_W1A + D_AUDIO        # rows [24, 64)  : W1v'
R_B1 = R_W1V + D_VIDEO         # row 64         : b1' (+ ones marker at col 64)
R_W2 = R_B1 + 8                # rows [72, 200) : W2 padded (128 x 128), row 64 = b2
ONES_COL = ASSOC_HID           # column of h forced to 1.0 (bias fold for b2)
SLAB_ROWS = R_W2 + LANES       # 200


def cmam_kernel(xa_ref, xv_ref, w_ref, out_ref):
    # Static slices of the packed weight slab (no extra DMA operands).
    w1a = w_ref[R_W1A:R_W1A + D_AUDIO, :]      # (24, 128)
    w1v = w_ref[R_W1V:R_W1V + D_VIDEO, :]      # (40, 128)
    b1 = w_ref[R_B1:R_B1 + 1, :]               # (1, 128), col 64 == 1.0
    w2 = w_ref[R_W2:R_W2 + LANES, :]           # (128, 128), row 64 == b2

    # Layer 1 (encoder Linears algebraically folded in) + ReLU.
    pre = (jnp.dot(xa_ref[...], w1a, preferred_element_type=jnp.float32)
           + jnp.dot(xv_ref[...], w1v, preferred_element_type=jnp.float32)
           + b1)
    h = jnp.maximum(pre, 0.0)                  # h[:, 64] == 1.0, h[:, 65:] == 0

    # Layer 2; b2 is carried by row 64 of w2 -> single lane-dense store.
    out_ref[...] = jnp.dot(h, w2,
                           preferred_element_type=jnp.float32).astype(out_ref.dtype)


def prepare_cmam_weights(params):
    """One-time (host/XLA) prep: fold encoders into layer 1, pack into one slab."""
    wa, ba, wv, bv, w1, b1, w2, b2 = params
    w1a = w1[:E_AUDIO, :]                      # (E_AUDIO, HID)
    w1v = w1[E_AUDIO:, :]                      # (E_VIDEO, HID)
    w1a_f = wa @ w1a                           # (D_AUDIO, HID)
    w1v_f = wv @ w1v                           # (D_VIDEO, HID)
    b1_f = b1 + ba @ w1a + bv @ w1v            # (1, HID)

    slab = jnp.zeros((SLAB_ROWS, LANES), jnp.float32)
    slab = slab.at[R_W1A:R_W1A + D_AUDIO, :ASSOC_HID].set(w1a_f)
    slab = slab.at[R_W1V:R_W1V + D_VIDEO, :ASSOC_HID].set(w1v_f)
    slab = slab.at[R_B1, :ASSOC_HID].set(b1_f[0])
    slab = slab.at[R_B1, ONES_COL].set(1.0)            # makes h[:, 64] == 1.0
    slab = slab.at[R_W2:R_W2 + ASSOC_HID, :ASSOC_OUT].set(w2)
    slab = slab.at[R_W2 + ONES_COL, :ASSOC_OUT].set(b2[0])  # b2 folded into matmul 2
    return slab


def basic_cmam_forward(xa, xv, weight_slab, return_padded=False):
    B = xa.shape[0]
    tb = B  # whole (small) batch in one block; B is a multiple of 8 here

    flops = 2 * B * (D_AUDIO + D_VIDEO) * LANES + 2 * B * LANES * LANES
    bytes_accessed = 4 * (xa.size + xv.size + weight_slab.size + B * LANES)

    out_padded = pl.pallas_call(
        cmam_kernel,
        out_shape=jax.ShapeDtypeStruct((B, LANES), jnp.float32),
        grid=(pl.cdiv(B, tb),),
        in_specs=[
            pl.BlockSpec((tb, D_AUDIO), lambda i: (i, 0)),
            pl.BlockSpec((tb, D_VIDEO), lambda i: (i, 0)),
            pl.BlockSpec((SLAB_ROWS, LANES), lambda i: (0, 0)),  # resident weights
        ],
        out_specs=pl.BlockSpec((tb, LANES), lambda i: (i, 0)),
        compiler_params=pltpu.CompilerParams(
            dimension_semantics=("parallel",)),
        cost_estimate=pl.CostEstimate(flops=flops, transcendentals=0,
                                      bytes_accessed=bytes_accessed),
    )(xa, xv, weight_slab)

    if return_padded:
        # Consumers that tolerate the 128-wide padded output (cols 32:128 are
        # exactly zero) can skip the extra slice op entirely.
        return out_padded
    return out_padded[:, :ASSOC_OUT]


def reference_forward(xa, xv, params):
    # Un-fused reference: follows the module structure literally.
    wa, ba, wv, bv, w1, b1, w2, b2 = params
    ea = xa @ wa + ba
    ev = xv @ wv + bv
    z = jnp.concatenate([ea, ev], axis=1)
    h = jnp.maximum(z @ w1 + b1, 0.0)
    return h @ w2 + b2


if __name__ == "__main__":
    key = jax.random.PRNGKey(0)
    ks = jax.random.split(key, 10)

    # deterministic synthetic inputs (two input modalities)
    xa = jax.random.normal(ks[0], (BATCH, D_AUDIO), dtype=jnp.float32)
    xv = jax.random.normal(ks[1], (BATCH, D_VIDEO), dtype=jnp.float32)

    # deterministic synthetic parameters (Linear weights stored [in, out])
    wa = 0.1 * jax.random.normal(ks[2], (D_AUDIO, E_AUDIO), dtype=jnp.float32)
    ba = 0.1 * jax.random.normal(ks[3], (1, E_AUDIO), dtype=jnp.float32)
    wv = 0.1 * jax.random.normal(ks[4], (D_VIDEO, E_VIDEO), dtype=jnp.float32)
    bv = 0.1 * jax.random.normal(ks[5], (1, E_VIDEO), dtype=jnp.float32)
    w1 = 0.1 * jax.random.normal(ks[6], (ASSOC_IN, ASSOC_HID), dtype=jnp.float32)
    b1 = 0.1 * jax.random.normal(ks[7], (1, ASSOC_HID), dtype=jnp.float32)
    w2 = 0.1 * jax.random.normal(ks[8], (ASSOC_HID, ASSOC_OUT), dtype=jnp.float32)
    b2 = 0.1 * jax.random.normal(ks[9], (1, ASSOC_OUT), dtype=jnp.float32)

    params = (wa, ba, wv, bv, w1, b1, w2, b2)

    # One-time weight prep (hoisted out of the per-call hot path).
    weight_slab = jax.block_until_ready(prepare_cmam_weights(params))

    fwd = jax.jit(basic_cmam_forward)
    out = jax.block_until_ready(fwd(xa, xv, weight_slab))

    ref = reference_forward(xa, xv, params)
    assert out.shape == (BATCH, ASSOC_OUT)
    assert jnp.allclose(out, ref, rtol=2e-2, atol=2e-2), "mismatch vs reference"

    # TODO(synk): BatchNorm1d / Dropout branches of assoc_net are Identity under
    # the default constructor args (assoc_use_bn=False, assoc_dropout=0.0) and
    # only the default fusion_fn='concat' is lowered ('sum'/'mean' not needed);
    # the algebraic encoder fold is only valid for this default config.
    print("KERNEL_OK")
</pallas_src>

<mosaic_0001>
module attributes {stable_mosaic.version = 11 : i64} {
  func.func @cmam_kernel(%arg0: i32, %arg1: memref<8x24xf32, #tpu.memory_space<vmem>>, %arg2: memref<8x40xf32, #tpu.memory_space<vmem>>, %arg3: memref<200x128xf32, #tpu.memory_space<vmem>>, %arg4: memref<8x128xf32, #tpu.memory_space<vmem>>) attributes {dimension_semantics = [#tpu.dimension_semantics<parallel>], iteration_bounds = array<i64: 1>, scalar_prefetch = 0 : i64, scratch_operands = 0 : i64, tpu.core_type = #tpu.core_type<tc>, window_params = [{transform_indices = @transform_0, window_bounds = array<i64: 8, 24>}, {transform_indices = @transform_1, window_bounds = array<i64: 8, 40>}, {pipeline_mode = #tpu.pipeline_mode<synchronous>, transform_indices = @transform_2, window_bounds = array<i64: 200, 128>}, {transform_indices = @transform_3, window_bounds = array<i64: 8, 128>}]} {
    %c0 = arith.constant 0 : index
    %c0_0 = arith.constant 0 : index
    %0 = vector.load %arg3[%c0, %c0_0] : memref<200x128xf32, #tpu.memory_space<vmem>>, vector<24x128xf32>
    %c24 = arith.constant 24 : index
    %c0_1 = arith.constant 0 : index
    %1 = vector.load %arg3[%c24, %c0_1] : memref<200x128xf32, #tpu.memory_space<vmem>>, vector<40x128xf32>
    %c64 = arith.constant 64 : index
    %c0_2 = arith.constant 0 : index
    %2 = vector.load %arg3[%c64, %c0_2] : memref<200x128xf32, #tpu.memory_space<vmem>>, vector<1x128xf32>
    %c72 = arith.constant 72 : index
    %c0_3 = arith.constant 0 : index
    %3 = vector.load %arg3[%c72, %c0_3] : memref<200x128xf32, #tpu.memory_space<vmem>>, vector<128x128xf32>
    %c0_4 = arith.constant 0 : index
    %c0_5 = arith.constant 0 : index
    %4 = vector.load %arg1[%c0_4, %c0_5] : memref<8x24xf32, #tpu.memory_space<vmem>>, vector<8x24xf32>
    %cst = arith.constant dense<0.000000e+00> : vector<8x128xf32>
    %5 = tpu.matmul %4, %0, %cst {dimension_numbers = #tpu.dot_dimension_numbers<[1], [0], [0], [1], [0, 0, 1, 1], [], []>} : vector<8x24xf32>, vector<24x128xf32>, vector<8x128xf32> -> vector<8x128xf32>
    %c0_6 = arith.constant 0 : index
    %c0_7 = arith.constant 0 : index
    %6 = vector.load %arg2[%c0_6, %c0_7] : memref<8x40xf32, #tpu.memory_space<vmem>>, vector<8x40xf32>
    %cst_8 = arith.constant dense<0.000000e+00> : vector<8x128xf32>
    %7 = tpu.matmul %6, %1, %cst_8 {dimension_numbers = #tpu.dot_dimension_numbers<[1], [0], [0], [1], [0, 0, 1, 1], [], []>} : vector<8x40xf32>, vector<40x128xf32>, vector<8x128xf32> -> vector<8x128xf32>
    %8 = arith.addf %5, %7 : vector<8x128xf32>
    %9 = vector.broadcast %2 : vector<1x128xf32> to vector<8x128xf32>
    %10 = arith.addf %8, %9 : vector<8x128xf32>
    %cst_9 = arith.constant 0.000000e+00 : f32
    %11 = vector.broadcast %cst_9 : f32 to vector<8x128xf32>
    %12 = arith.maximumf %10, %11 : vector<8x128xf32>
    %cst_10 = arith.constant dense<0.000000e+00> : vector<8x128xf32>
    %13 = tpu.matmul %12, %3, %cst_10 {dimension_numbers = #tpu.dot_dimension_numbers<[1], [0], [0], [1], [0, 0, 1, 1], [], []>} : vector<8x128xf32>, vector<128x128xf32>, vector<8x128xf32> -> vector<8x128xf32>
    %c0_11 = arith.constant 0 : index
    %c0_12 = arith.constant 0 : index
    %14 = vector.load %arg4[%c0_11, %c0_12] : memref<8x128xf32, #tpu.memory_space<vmem>>, vector<8x128xf32>
    tpu.vector_store %arg4[%c0_11, %c0_12], %13 {strides = array<i32>} : memref<8x128xf32, #tpu.memory_space<vmem>>, vector<8x128xf32>,
    return
  }
  func.func @transform_0(%arg0: i32) -> (i32, i32) {
    %c0_i32 = arith.constant 0 : i32
    %c0_i32_0 = arith.constant 0 : i32
    return %arg0, %c0_i32 : i32, i32
  }
  func.func @transform_1(%arg0: i32) -> (i32, i32) {
    %c0_i32 = arith.constant 0 : i32
    %c0_i32_0 = arith.constant 0 : i32
    return %arg0, %c0_i32 : i32, i32
  }
  func.func @transform_2(%arg0: i32) -> (i32, i32) {
    %c0_i32 = arith.constant 0 : i32
    %c0_i32_0 = arith.constant 0 : i32
    %c0_i32_1 = arith.constant 0 : i32
    return %c0_i32, %c0_i32_0 : i32, i32
  }
  func.func @transform_3(%arg0: i32) -> (i32, i32) {
    %c0_i32 = arith.constant 0 : i32
    %c0_i32_0 = arith.constant 0 : i32
    return %arg0, %c0_i32 : i32, i32
  }
}

</mosaic_0001>

<llo_original>
// kernel: basic_cmam_forward.1
$region0: #{basic_cmam_forward.1}
  #allocation0 [shape = 'u32[]', space=smem, size = 0x4, offset = 0x4, fixed_abs, tag = 'smem constant byte address 0x4 - core index']
  #allocation1 [shape = 'u32[144,128]{1,0:T(1,128)}', space=vmem, size = 0x12000, scoped, tag = 'internal scratch']
  %s0 = inlined_call_operand.hbm [shape: f32[8,24], index: 0, kind: input, shape index: {}]
  %s1 = inlined_call_operand.hbm [shape: f32[8,40], index: 1, kind: input, shape index: {}]
  %s2 = inlined_call_operand.hbm [shape: f32[200,128], index: 2, kind: input, shape index: {}]
  %s3 = inlined_call_operand.hbm [shape: f32[8,128], index: 3, kind: output, shape index: {}]
  %s4 = sld [smem:[#allocation0]]
  $region34: #{basic_cmam_forward.1} parent=0
    _
  %s6 = ssub.s32 1, %s4
  %s7 = scalar_select 0, %s6, %s4
  $region1: #{basic_cmam_forward.1} parent=0
    #allocation2 [shape = 'u8[4096]{0}', space=vmem, size = 0x1000, scoped, tag = 'input window, operand 0, single buffered']
    #allocation3 [shape = 's32[1]{0}', space=sflag, size = 0x4, scoped, tag = 'scoped memory for basic_cmam_forward.1']
    #allocation4 [shape = 's32[1]{0}', space=sflag, size = 0x4, scoped, tag = 'scoped memory for basic_cmam_forward.1']
    #allocation5 [shape = 'u8[4096]{0}', space=vmem, size = 0x1000, scoped, tag = 'input window, operand 1, single buffered']
    #allocation6 [shape = 's32[1]{0}', space=sflag, size = 0x4, scoped, tag = 'scoped memory for basic_cmam_forward.1']
    #allocation7 [shape = 'u8[102400]{0}', space=vmem, size = 0x19000, scoped, tag = 'input window, operand 2, single buffered']
    #allocation8 [shape = 'u8[4096]{0}', space=vmem, size = 0x1000, scoped, tag = 'output window, operand 0, single buffered']
    %8 = vsyncpa [#allocation3], 0
    %9 = vsyncpa [#allocation6], 0
    %10 = vsyncpa [#allocation4], 0
    // Predicated region
    $region2: #{basic_cmam_forward.1} parent=1 // pred_check
      _
    $region3: #{basic_cmam_forward.1} parent=1 // pred_check_branch
      %12 = sbr.rel (0) target = $region5
    $region4: #{basic_cmam_forward.1} parent=1 // pred_region
      %s14 = ssub.s32 128, 128
      %15 = vsyncadd [#allocation3], %s14
      %s17 = sshll.u32 [#allocation2], 4
      %s18 = int_to_ptr.vmem [resolvable:$true] %s17
      %20 = dma.hbm_to_vmem [thread:$0]  %s0, 128, %s18, [#allocation3]
    $region5: #{basic_cmam_forward.1} parent=1 // pred_fallthru
      _
    // Predicated region
    $region6: #{basic_cmam_forward.1} parent=1 // pred_check
      _
    $region7: #{basic_cmam_forward.1} parent=1 // pred_check_branch
      %22 = sbr.rel (0) target = $region9
    $region8: #{basic_cmam_forward.1} parent=1 // pred_region
      %s24 = ssub.s32 128, 128
      %25 = vsyncadd [#allocation6], %s24
      %s27 = sshll.u32 [#allocation5], 4
      %s28 = int_to_ptr.vmem [resolvable:$true] %s27
      %30 = dma.hbm_to_vmem [thread:$0]  %s1, 128, %s28, [#allocation6]
    $region9: #{basic_cmam_forward.1} parent=1 // pred_fallthru
      _
    // Predicated region
    $region10: #{basic_cmam_forward.1} parent=1 // pred_check
      _
    $region11: #{basic_cmam_forward.1} parent=1 // pred_check_branch
      %32 = sbr.rel (0) target = $region13
    $region12: #{basic_cmam_forward.1} parent=1 // pred_region
      %s34 = ssub.s32 3200, 3200
      %35 = vsyncadd [#allocation6], %s34
      %s36 = sshll.u32 [#allocation7], 4
      %s37 = int_to_ptr.vmem [resolvable:$true] %s36
      %42 = dma.hbm_to_vmem [thread:$0]  %s2, 3200, %s37, [#allocation6], 128, 128, 8
    $region13: #{basic_cmam_forward.1} parent=1 // pred_fallthru
      _
    // Predicated region
    $region14: #{basic_cmam_forward.1} parent=1 // pred_check
      _
    $region15: #{basic_cmam_forward.1} parent=1 // pred_check_branch
      %44 = sbr.rel (0) target = $region17
    $region16: #{basic_cmam_forward.1} parent=1 // pred_region
      %45 = dma.done [#allocation3], 128
    $region17: #{basic_cmam_forward.1} parent=1 // pred_fallthru
      _
    // Predicated region
    $region18: #{basic_cmam_forward.1} parent=1 // pred_check
      _
    $region19: #{basic_cmam_forward.1} parent=1 // pred_check_branch
      %47 = sbr.rel (0) target = $region21
    $region20: #{basic_cmam_forward.1} parent=1 // pred_region
      %48 = dma.done [#allocation6], 128
    $region21: #{basic_cmam_forward.1} parent=1 // pred_fallthru
      _
    // Predicated region
    $region22: #{basic_cmam_forward.1} parent=1 // pred_check
      _
    $region23: #{basic_cmam_forward.1} parent=1 // pred_check_branch
      %50 = sbr.rel (0) target = $region25
    $region24: #{basic_cmam_forward.1} parent=1 // pred_region
      %51 = dma.done [#allocation6], 3200
    $region25: #{basic_cmam_forward.1} parent=1 // pred_fallthru
      _
    %v52 = vld [vmem:[#allocation7] sm:$0xff]
    %v53 = vld [vmem:[#allocation7 + $0x8] sm:$0xff]
    %v54 = vld [vmem:[#allocation7 + $0x10] sm:$0xff]
    %v55 = vld [vmem:[#allocation7 + $0x18] sm:$0xff]
    %v56 = vld [vmem:[#allocation7 + $0x20] sm:$0xff]
    %v57 = vld [vmem:[#allocation7 + $0x28] sm:$0xff]
    %v58 = vld [vmem:[#allocation7 + $0x30] sm:$0xff]
    %v59 = vld [vmem:[#allocation7 + $0x38] sm:$0xff]
    %v60 = vld [vmem:[#allocation7 + $0x40] sm:$0x1]
    %v61 = vld [vmem:[#allocation7 + $0x48] sm:$0xff]
    %v62 = vld [vmem:[#allocation7 + $0x50] sm:$0xff]
    %v63 = vld [vmem:[#allocation7 + $0x58] sm:$0xff]
    %v64 = vld [vmem:[#allocation7 + $0x60] sm:$0xff]
    %v65 = vld [vmem:[#allocation7 + $0x68] sm:$0xff]
    %v66 = vld [vmem:[#allocation7 + $0x70] sm:$0xff]
    %v67 = vld [vmem:[#allocation7 + $0x78] sm:$0xff]
    %v68 = vld [vmem:[#allocation7 + $0x80] sm:$0xff]
    %v69 = vld [vmem:[#allocation7 + $0x88] sm:$0xff]
    %v70 = vld [vmem:[#allocation7 + $0x90] sm:$0xff]
    %v71 = vld [vmem:[#allocation7 + $0x98] sm:$0xff]
    %v72 = vld [vmem:[#allocation7 + $0xa0] sm:$0xff]
    %v73 = vld [vmem:[#allocation7 + $0xa8] sm:$0xff]
    %v74 = vld [vmem:[#allocation7 + $0xb0] sm:$0xff]
    %v75 = vld [vmem:[#allocation7 + $0xb8] sm:$0xff]
    %v76 = vld [vmem:[#allocation7 + $0xc0] sm:$0xff]
    %v77 = vld [vmem:[#allocation2] sm:$0xff]
    %v78 = vld [vmem:[#allocation5] sm:$0xff]
    %vm79 = vcmask 326656
    %v81 = vsel %vm79, %v78, 0
    %83 = vmatprep.subr.mxu0 0.0
    %84 = vmatpush1.msra.mxu0 %v55
    %85 = vmatprep.subr.mxu0 0.0
    %86 = vmatpush1.msra.mxu0 %v56
    %87 = vmatprep.subr.mxu0 0.0
    %88 = vmatpush1.msra.mxu0 %v57
    %89 = vmatprep.subr.mxu0 0.0
    %90 = vmatpush1.msra.mxu0 %v58
    %91 = vmatprep.subr.mxu0 0.0
    %92 = vmatpush1.msra.mxu0 %v59
    %93 = vmatprep.subr.mxu0 0.0
    %94 = vmatpush1.msra.mxu0 0.0
    %95 = vmatprep.subr.mxu0 0.0
    %96 = vmatpush1.msra.mxu0 0.0
    %97 = vmatprep.subr.mxu0 0.0
    %98 = vmatpush1.msra.mxu0 0.0
    %99 = vmatprep.subr.mxu0 0.0
    %100 = vmatpush1.msra.mxu0 0.0
    %101 = vmatprep.subr.mxu0 0.0
    %102 = vmatpush1.msra.mxu0 0.0
    %103 = vmatprep.subr.mxu0 0.0
    %104 = vmatpush1.msra.mxu0 0.0
    %105 = vmatprep.subr.mxu0 0.0
    %106 = vmatpush1.msra.mxu0 0.0
    %107 = vmatprep.subr.mxu0 0.0
    %108 = vmatpush1.msra.mxu0 0.0
    %109 = vmatprep.subr.mxu0 0.0
    %110 = vmatpush1.msra.mxu0 0.0
    %111 = vmatprep.subr.mxu0 0.0
    %112 = vmatpush1.msra.mxu0 0.0
    %113 = vmatprep.subr.mxu0 0.0
    %114 = vmatpush1.msra.mxu0 0.0
    %115 = vmatprep.subr.mxu0 0.0
    %116 = vmatpush1.msra.mxu0 0.0
    %117 = vmatprep.subr.mxu0 0.0
    %118 = vmatpush1.msra.mxu0 0.0
    %119 = vmatprep.subr.mxu0 0.0
    %120 = vmatpush1.msra.mxu0 0.0
    %121 = vmatprep.subr.mxu0 0.0
    %122 = vmatpush1.msra.mxu0 0.0
    %123 = vmatprep.subr.mxu0 0.0
    %124 = vmatpush1.msra.mxu0 0.0
    %125 = vmatprep.subr.mxu0 0.0
    %126 = vmatpush1.msra.mxu0 0.0
    %127 = vmatprep.subr.mxu0 0.0
    %128 = vmatpush1.msra.mxu0 0.0
    %129 = vmatprep.subr.mxu0 0.0
    %130 = vmatpush1.msra.mxu0 0.0
    %131 = vmatprep.subr.mxu0 0.0
    %132 = vmatpush1.msra.mxu0 0.0
    %133 = vmatprep.subr.mxu0 0.0
    %134 = vmatpush1.msra.mxu0 0.0
    %135 = vmatprep.subr.mxu0 0.0
    %136 = vmatpush1.msra.mxu0 0.0
    %137 = vmatprep.subr.mxu0 0.0
    %138 = vmatpush1.msra.mxu0 0.0
    %139 = vmatprep.subr.mxu0 0.0
    %140 = vmatpush1.msra.mxu0 0.0
    %141 = vmatprep.subr.mxu0 0.0
    %142 = vmatpush1.msra.mxu0 0.0
    %143 = vmatprep.subr.mxu0 0.0
    %144 = vmatpush1.msra.mxu0 0.0
    %145 = vmatprep.subr.mxu0 0.0
    %146 = vmatpush1.msra.mxu0 0.0
    %147 = vmatprep.mubr.f32.mxu0 0.0
    %148 = vmatmul.mubr.f32.gmra.mrb[0].mxu0 %v81
    %v149 = vpop.f32.mrb[0].mxu0
    %v150 = vadd.f32 0.0, %v149
    %v151 = vpop.f32.mrb[0].mxu0
    %152 = vdwg.mxu0
    %vm153 = vcmask 195584
    %v155 = vsel %vm153, %v77, 0
    %157 = vmatprep.subr.mxu0 0.0
    %158 = vmatpush1.msra.mxu0 %v52
    %159 = vmatprep.subr.mxu0 0.0
    %160 = vmatpush1.msra.mxu0 %v53
    %161 = vmatprep.subr.mxu0 0.0
    %162 = vmatpush1.msra.mxu0 %v54
    %163 = vmatprep.subr.mxu0 0.0
    %164 = vmatpush1.msra.mxu0 0.0
    %165 = vmatprep.subr.mxu0 0.0
    %166 = vmatpush1.msra.mxu0 0.0
    %167 = vmatprep.subr.mxu0 0.0
    %168 = vmatpush1.msra.mxu0 0.0
    %169 = vmatprep.subr.mxu0 0.0
    %170 = vmatpush1.msra.mxu0 0.0
    %171 = vmatprep.subr.mxu0 0.0
    %172 = vmatpush1.msra.mxu0 0.0
    %173 = vmatprep.subr.mxu0 0.0
    %174 = vmatpush1.msra.mxu0 0.0
    %175 = vmatprep.subr.mxu0 0.0
    %176 = vmatpush1.msra.mxu0 0.0
    %177 = vmatprep.subr.mxu0 0.0
    %178 = vmatpush1.msra.mxu0 0.0
    %179 = vmatprep.subr.mxu0 0.0
    %180 = vmatpush1.msra.mxu0 0.0
    %181 = vmatprep.subr.mxu0 0.0
    %182 = vmatpush1.msra.mxu0 0.0
    %183 = vmatprep.subr.mxu0 0.0
    %184 = vmatpush1.msra.mxu0 0.0
    %185 = vmatprep.subr.mxu0 0.0
    %186 = vmatpush1.msra.mxu0 0.0
    %187 = vmatprep.subr.mxu0 0.0
    %188 = vmatpush1.msra.mxu0 0.0
    %189 = vmatprep.subr.mxu0 0.0
    %190 = vmatpush1.msra.mxu0 0.0
    %191 = vmatprep.subr.mxu0 0.0
    %192 = vmatpush1.msra.mxu0 0.0
    %193 = vmatprep.subr.mxu0 0.0
    %194 = vmatpush1.msra.mxu0 0.0
    %195 = vmatprep.subr.mxu0 0.0
    %196 = vmatpush1.msra.mxu0 0.0
    %197 = vmatprep.subr.mxu0 0.0
    %198 = vmatpush1.msra.mxu0 0.0
    %199 = vmatprep.subr.mxu0 0.0
    %200 = vmatpush1.msra.mxu0 0.0
    %201 = vmatprep.subr.mxu0 0.0
    %202 = vmatpush1.msra.mxu0 0.0
    %203 = vmatprep.subr.mxu0 0.0
    %204 = vmatpush1.msra.mxu0 0.0
    %205 = vmatprep.subr.mxu0 0.0
    %206 = vmatpush1.msra.mxu0 0.0
    %207 = vmatprep.subr.mxu0 0.0
    %208 = vmatpush1.msra.mxu0 0.0
    %209 = vmatprep.subr.mxu0 0.0
    %210 = vmatpush1.msra.mxu0 0.0
    %211 = vmatprep.subr.mxu0 0.0
    %212 = vmatpush1.msra.mxu0 0.0
    %213 = vmatprep.subr.mxu0 0.0
    %214 = vmatpush1.msra.mxu0 0.0
    %215 = vmatprep.subr.mxu0 0.0
    %216 = vmatpush1.msra.mxu0 0.0
    %217 = vmatprep.subr.mxu0 0.0
    %218 = vmatpush1.msra.mxu0 0.0
    %219 = vmatprep.subr.mxu0 0.0
    %220 = vmatpush1.msra.mxu0 0.0
    %221 = vmatprep.mubr.f32.mxu0 0.0
    %222 = vmatmul.mubr.f32.gmra.mrb[0].mxu0 %v155
    %v223 = vpop.f32.mrb[0].mxu0
    %v224 = vadd.f32 %v150, %v223
    %v225 = vpop.f32.mrb[0].mxu0
    %226 = vdwg.mxu0
    %v227 = vlaneseq
    %v228 = vshrl.u32 %v227, 7
    %v229 = vsub.s32 0, %v228
    %v230 = vrot.slane %v60, %v229
    %v231 = vadd.f32 %v224, %v230
    %v232 = vmax.f32 %v231, 0.0
    %233 = vmatprep.subr.mxu0 0.0
    %234 = vmatpush1.msra.mxu0 %v61
    %235 = vmatprep.subr.mxu0 0.0
    %236 = vmatpush1.msra.mxu0 %v62
    %237 = vmatprep.subr.mxu0 0.0
    %238 = vmatpush1.msra.mxu0 %v63
    %239 = vmatprep.subr.mxu0 0.0
    %240 = vmatpush1.msra.mxu0 %v64
    %241 = vmatprep.subr.mxu0 0.0
    %242 = vmatpush1.msra.mxu0 %v65
    %243 = vmatprep.subr.mxu0 0.0
    %244 = vmatpush1.msra.mxu0 %v66
    %245 = vmatprep.subr.mxu0 0.0
    %246 = vmatpush1.msra.mxu0 %v67
    %247 = vmatprep.subr.mxu0 0.0
    %248 = vmatpush1.msra.mxu0 %v68
    %249 = vmatprep.subr.mxu0 0.0
    %250 = vmatpush1.msra.mxu0 %v69
    %251 = vmatprep.subr.mxu0 0.0
    %252 = vmatpush1.msra.mxu0 %v70
    %253 = vmatprep.subr.mxu0 0.0
    %254 = vmatpush1.msra.mxu0 %v71
    %255 = vmatprep.subr.mxu0 0.0
    %256 = vmatpush1.msra.mxu0 %v72
    %257 = vmatprep.subr.mxu0 0.0
    %258 = vmatpush1.msra.mxu0 %v73
    %259 = vmatprep.subr.mxu0 0.0
    %260 = vmatpush1.msra.mxu0 %v74
    %261 = vmatprep.subr.mxu0 0.0
    %262 = vmatpush1.msra.mxu0 %v75
    %263 = vmatprep.subr.mxu0 0.0
    %264 = vmatpush1.msra.mxu0 %v76
    %265 = vmatprep.subr.mxu0 0.0
    %266 = vmatpush1.msra.mxu0 0.0
    %267 = vmatprep.subr.mxu0 0.0
    %268 = vmatpush1.msra.mxu0 0.0
    %269 = vmatprep.subr.mxu0 0.0
    %270 = vmatpush1.msra.mxu0 0.0
    %271 = vmatprep.subr.mxu0 0.0
    %272 = vmatpush1.msra.mxu0 0.0
    %273 = vmatprep.subr.mxu0 0.0
    %274 = vmatpush1.msra.mxu0 0.0
    %275 = vmatprep.subr.mxu0 0.0
    %276 = vmatpush1.msra.mxu0 0.0
    %277 = vmatprep.subr.mxu0 0.0
    %278 = vmatpush1.msra.mxu0 0.0
    %279 = vmatprep.subr.mxu0 0.0
    %280 = vmatpush1.msra.mxu0 0.0
    %281 = vmatprep.subr.mxu0 0.0
    %282 = vmatpush1.msra.mxu0 0.0
    %283 = vmatprep.subr.mxu0 0.0
    %284 = vmatpush1.msra.mxu0 0.0
    %285 = vmatprep.subr.mxu0 0.0
    %286 = vmatpush1.msra.mxu0 0.0
    %287 = vmatprep.subr.mxu0 0.0
    %288 = vmatpush1.msra.mxu0 0.0
    %289 = vmatprep.subr.mxu0 0.0
    %290 = vmatpush1.msra.mxu0 0.0
    %291 = vmatprep.subr.mxu0 0.0
    %292 = vmatpush1.msra.mxu0 0.0
    %293 = vmatprep.subr.mxu0 0.0
    %294 = vmatpush1.msra.mxu0 0.0
    %295 = vmatprep.subr.mxu0 0.0
    %296 = vmatpush1.msra.mxu0 0.0
    %297 = vmatprep.mubr.f32.mxu0 0.0
    %298 = vmatmul.mubr.f32.gmra.mrb[0].mxu0 %v232
    %v299 = vpop.f32.mrb[0].mxu0
    %v300 = vadd.f32 0.0, %v299
    %v301 = vpop.f32.mrb[0].mxu0
    %302 = vdwg.mxu0
    %303 = vst [vmem:[#allocation8] sm:$0xff] %v300
    // Predicated region
    $region26: #{basic_cmam_forward.1} parent=1 // pred_check
      _
    $region27: #{basic_cmam_forward.1} parent=1 // pred_check_branch
      %305 = sbr.rel (0) target = $region29
    $region28: #{basic_cmam_forward.1} parent=1 // pred_region
      %s307 = ssub.s32 128, 128
      %308 = vsyncadd [#allocation4], %s307
      %s310 = sshll.u32 [#allocation8], 4
      %s311 = int_to_ptr.vmem [resolvable:$true] %s310
      %313 = dma.vmem_to_hbm [thread:$0]  %s311, 128, %s3, [#allocation4]
    $region29: #{basic_cmam_forward.1} parent=1 // pred_fallthru
      _
    // Predicated region
    $region30: #{basic_cmam_forward.1} parent=1 // pred_check
      _
    $region31: #{basic_cmam_forward.1} parent=1 // pred_check_branch
      %315 = sbr.rel (0) target = $region33
    $region32: #{basic_cmam_forward.1} parent=1 // pred_region
      %316 = dma.done [#allocation4], 128
    $region33: #{basic_cmam_forward.1} parent=1 // pred_fallthru
      _
    %317 = vsyncpa [#allocation3], 1
    %318 = vsyncpa [#allocation6], 1
    %319 = vsyncpa [#allocation4], 1

</llo_original>
